<compile_context>
chip_gen: v6e
topology: v6e:2x2x1
jax: 0.10.0
libtpu: 0.0.40
codegen_flags: <defaults>
</compile_context>

<pallas_src>
import functools

import jax
import jax.numpy as jnp
from jax import lax
from jax.experimental import pallas as pl
from jax.experimental.pallas import tpu as pltpu


def _round_up(n, m):
    return ((n + m - 1) // m) * m


def _mlp_kernel(x_ref, w1_ref, b1_ref, w2_ref, b2_ref, o_ref, *, precision):
    # Layer 1 on the MXU.  x is cast to the weight operand dtype here (no extra
    # HBM copy of x); accumulation is always f32.
    x = x_ref[...].astype(w1_ref.dtype)
    h = jnp.dot(x, w1_ref[...], preferred_element_type=jnp.float32,
                precision=precision)
    h = jax.nn.sigmoid(h + b1_ref[...])                 # b1 is (1, H) -> broadcast
    # Layer 2: hidden cast back to the MXU operand dtype, f32 accumulation.
    y = jnp.dot(h.astype(w2_ref.dtype), w2_ref[...],
                preferred_element_type=jnp.float32, precision=precision)
    y = jax.nn.sigmoid(y + b2_ref[...])                 # b2 is (1, D_out)
    o_ref[...] = y.astype(o_ref.dtype)


def _vmem_estimate(tm, d_in, h, d_out, w_bytes):
    """Rough VMEM footprint: double-buffered x/out streams + resident weights."""
    stream = 2 * tm * (d_in + d_out) * 4                 # x and out tiles (f32)
    weights = 2 * (d_in * h + h * d_out) * w_bytes       # default double-buffered
    biases = 2 * (h + d_out) * 4
    return stream + weights + biases


def _choose_tm(batch, align, d_in, h, d_out, w_bytes):
    b_al = _round_up(batch, align)
    if b_al <= align:
        tm = b_al
    else:
        # >=2 tiles so v7x megacore gets work on both TensorCores; cdiv-based
        # sizing so the last tile never drags in ~tm-1 dead rows.
        tm = min(1024, _round_up(pl.cdiv(batch, 2), align))
    # Shrink tm until the estimate fits a conservative VMEM budget (safe on
    # v5e/v6e/v7x scoped limits with headroom).
    budget = 40 * 1024 * 1024
    while tm > align and _vmem_estimate(tm, d_in, h, d_out, w_bytes) > budget:
        tm = max(align, _round_up(tm // 2, align))
    return tm


def prepare_params(w1, b1, w2, b2, *, mxu_dtype=jnp.float32):
    """One-time weight prep (call once, reuse across forwards).

    Weights are stored [in_features, out_features] (transpose of PyTorch's
    [out, in] layout) and cast once to the MXU operand dtype; biases stay f32.
    Use mxu_dtype=jnp.bfloat16 on v6e/v7x to halve weight bandwidth and hit the
    native bf16 MXU; keep f32 where exactness matters (e.g. v5e checks).
    """
    return (jnp.asarray(w1, mxu_dtype),
            jnp.asarray(b1, jnp.float32).reshape(1, -1),
            jnp.asarray(w2, mxu_dtype),
            jnp.asarray(b2, jnp.float32).reshape(1, -1))


@jax.jit
def net_forward(x, w1, b1, w2, b2):
    """x: (B, D_in) f32; w1/w2 pre-cast via prepare_params; b1/b2 f32 (1, ...)."""
    B, D_in = x.shape
    H = w1.shape[1]
    D_out = w2.shape[1]

    w_bytes = jnp.dtype(w1.dtype).itemsize
    align = 16 if w_bytes < 4 else 8            # bf16 packs 2 rows per sublane
    tm = _choose_tm(B, align, D_in, H, D_out, w_bytes)
    grid = (pl.cdiv(B, tm),)

    est = _vmem_estimate(tm, D_in, H, D_out, w_bytes)
    vmem_limit = int(min(48 * 1024 * 1024, max(16 * 1024 * 1024, 2 * est)))

    precision = (lax.Precision.HIGHEST if w1.dtype == jnp.float32
                 else lax.Precision.DEFAULT)

    # TODO(synk): if the weights alone exceed the VMEM budget (very large
    # D_in/H), switch to a K-tiled grid with an f32 accumulator instead of
    # keeping the weights VMEM-resident.

    return pl.pallas_call(
        functools.partial(_mlp_kernel, precision=precision),
        out_shape=jax.ShapeDtypeStruct((B, D_out), jnp.float32),
        grid_spec=pltpu.PrefetchScalarGridSpec(
            num_scalar_prefetch=0,
            grid=grid,
            in_specs=[
                # x streams per batch tile (unpadded: full D_in as last dim).
                pl.BlockSpec((tm, D_in), lambda i: (i, 0)),
                # Weights / biases: constant index_map => fetched once and
                # VMEM-resident across all grid iterations.
                pl.BlockSpec((D_in, H), lambda i: (0, 0)),
                pl.BlockSpec((1, H), lambda i: (0, 0)),
                pl.BlockSpec((H, D_out), lambda i: (0, 0)),
                pl.BlockSpec((1, D_out), lambda i: (0, 0)),
            ],
            out_specs=pl.BlockSpec((tm, D_out), lambda i: (i, 0)),
        ),
        compiler_params=pltpu.CompilerParams(
            dimension_semantics=("parallel",),   # batch tiles are independent
            vmem_limit_bytes=vmem_limit,
        ),
    )(x, w1, b1, w2, b2)


def init_params(key, d_in, h, d_out):
    """Deterministic init mimicking nn.Linear's U(-1/sqrt(fan_in), 1/sqrt(fan_in))."""
    k1, k2, k3, k4 = jax.random.split(key, 4)
    bound1 = 1.0 / jnp.sqrt(d_in)
    bound2 = 1.0 / jnp.sqrt(h)
    w1 = jax.random.uniform(k1, (d_in, h), jnp.float32, -bound1, bound1)
    b1 = jax.random.uniform(k2, (1, h), jnp.float32, -bound1, bound1)
    w2 = jax.random.uniform(k3, (h, d_out), jnp.float32, -bound2, bound2)
    b2 = jax.random.uniform(k4, (1, d_out), jnp.float32, -bound2, bound2)
    return w1, b1, w2, b2


if __name__ == "__main__":
    key = jax.random.PRNGKey(0)
    D_in, H, D_out = 16, 32, 8
    batch = 8

    kx, kp = jax.random.split(key)
    x = jax.random.normal(kx, (batch, D_in), jnp.float32)
    w1, b1, w2, b2 = init_params(kp, D_in, H, D_out)

    # Reference in plain JAX (same math as the PyTorch forward).
    ref = jax.nn.sigmoid(jax.nn.sigmoid(x @ w1 + b1) @ w2 + b2)

    # Exact f32 MXU path (weights cast/prepped once, reused per call).
    p_f32 = prepare_params(w1, b1, w2, b2, mxu_dtype=jnp.float32)
    out = net_forward(x, *p_f32)
    jax.block_until_ready(out)
    assert out.shape == (batch, D_out)
    assert jnp.allclose(out, ref, atol=1e-5), "f32 mismatch vs reference"

    # bf16 MXU-operand path (recommended on v6e/v7x); looser tolerance.
    p_bf16 = prepare_params(w1, b1, w2, b2, mxu_dtype=jnp.bfloat16)
    out_bf16 = net_forward(x, *p_bf16)
    jax.block_until_ready(out_bf16)
    assert out_bf16.shape == (batch, D_out)
    assert jnp.allclose(out_bf16, ref, atol=3e-2), "bf16 mismatch vs reference"

    print("KERNEL_OK")
</pallas_src>

<mosaic_0001>
module attributes {stable_mosaic.version = 11 : i64} {
  func.func @_mlp_kernel(%arg0: i32, %arg1: memref<8x16xf32, #tpu.memory_space<vmem>>, %arg2: memref<16x32xf32, #tpu.memory_space<vmem>>, %arg3: memref<1x32xf32, #tpu.memory_space<vmem>>, %arg4: memref<32x8xf32, #tpu.memory_space<vmem>>, %arg5: memref<1x8xf32, #tpu.memory_space<vmem>>, %arg6: memref<8x8xf32, #tpu.memory_space<vmem>>) attributes {dimension_semantics = [#tpu.dimension_semantics<parallel>], iteration_bounds = array<i64: 1>, scalar_prefetch = 0 : i64, scratch_operands = 0 : i64, tpu.core_type = #tpu.core_type<tc>, window_params = [{transform_indices = @transform_0, window_bounds = array<i64: 8, 16>}, {pipeline_mode = #tpu.pipeline_mode<synchronous>, transform_indices = @transform_1, window_bounds = array<i64: 16, 32>}, {pipeline_mode = #tpu.pipeline_mode<synchronous>, transform_indices = @transform_2, window_bounds = array<i64: 1, 32>}, {pipeline_mode = #tpu.pipeline_mode<synchronous>, transform_indices = @transform_3, window_bounds = array<i64: 32, 8>}, {pipeline_mode = #tpu.pipeline_mode<synchronous>, transform_indices = @transform_4, window_bounds = array<i64: 1, 8>}, {transform_indices = @transform_5, window_bounds = array<i64: 8, 8>}]} {
    %c0 = arith.constant 0 : index
    %c0_0 = arith.constant 0 : index
    %0 = vector.load %arg1[%c0, %c0_0] : memref<8x16xf32, #tpu.memory_space<vmem>>, vector<8x16xf32>
    %c0_1 = arith.constant 0 : index
    %c0_2 = arith.constant 0 : index
    %1 = vector.load %arg2[%c0_1, %c0_2] : memref<16x32xf32, #tpu.memory_space<vmem>>, vector<16x32xf32>
    %cst = arith.constant dense<0.000000e+00> : vector<8x32xf32>
    %2 = tpu.matmul %0, %1, %cst {dimension_numbers = #tpu.dot_dimension_numbers<[1], [0], [0], [1], [0, 0, 1, 1], [], []>, precision = #tpu.contract_precision<fp32>} : vector<8x16xf32>, vector<16x32xf32>, vector<8x32xf32> -> vector<8x32xf32>
    %c0_3 = arith.constant 0 : index
    %c0_4 = arith.constant 0 : index
    %3 = vector.load %arg3[%c0_3, %c0_4] : memref<1x32xf32, #tpu.memory_space<vmem>>, vector<1x32xf32>
    %4 = vector.broadcast %3 : vector<1x32xf32> to vector<8x32xf32>
    %5 = arith.addf %2, %4 : vector<8x32xf32>
    %6 = arith.negf %5 : vector<8x32xf32>
    %7 = math.exp %6 : vector<8x32xf32>
    %cst_5 = arith.constant 1.000000e+00 : f32
    %8 = vector.broadcast %cst_5 : f32 to vector<8x32xf32>
    %9 = arith.addf %8, %7 : vector<8x32xf32>
    %10 = arith.divf %8, %9 : vector<8x32xf32>
    %c0_6 = arith.constant 0 : index
    %c0_7 = arith.constant 0 : index
    %11 = vector.load %arg4[%c0_6, %c0_7] : memref<32x8xf32, #tpu.memory_space<vmem>>, vector<32x8xf32>
    %cst_8 = arith.constant dense<0.000000e+00> : vector<8x8xf32>
    %12 = tpu.matmul %10, %11, %cst_8 {dimension_numbers = #tpu.dot_dimension_numbers<[1], [0], [0], [1], [0, 0, 1, 1], [], []>, precision = #tpu.contract_precision<fp32>} : vector<8x32xf32>, vector<32x8xf32>, vector<8x8xf32> -> vector<8x8xf32>
    %c0_9 = arith.constant 0 : index
    %c0_10 = arith.constant 0 : index
    %13 = vector.load %arg5[%c0_9, %c0_10] : memref<1x8xf32, #tpu.memory_space<vmem>>, vector<1x8xf32>
    %14 = vector.broadcast %13 : vector<1x8xf32> to vector<8x8xf32>
    %15 = arith.addf %12, %14 : vector<8x8xf32>
    %16 = arith.negf %15 : vector<8x8xf32>
    %17 = math.exp %16 : vector<8x8xf32>
    %cst_11 = arith.constant 1.000000e+00 : f32
    %18 = vector.broadcast %cst_11 : f32 to vector<8x8xf32>
    %19 = arith.addf %18, %17 : vector<8x8xf32>
    %20 = arith.divf %18, %19 : vector<8x8xf32>
    %c0_12 = arith.constant 0 : index
    %c0_13 = arith.constant 0 : index
    %21 = vector.load %arg6[%c0_12, %c0_13] : memref<8x8xf32, #tpu.memory_space<vmem>>, vector<8x8xf32>
    tpu.vector_store %arg6[%c0_12, %c0_13], %20 {strides = array<i32>} : memref<8x8xf32, #tpu.memory_space<vmem>>, vector<8x8xf32>,
    return
  }
  func.func @transform_0(%arg0: i32) -> (i32, i32) {
    %c0_i32 = arith.constant 0 : i32
    %c0_i32_0 = arith.constant 0 : i32
    return %arg0, %c0_i32 : i32, i32
  }
  func.func @transform_1(%arg0: i32) -> (i32, i32) {
    %c0_i32 = arith.constant 0 : i32
    %c0_i32_0 = arith.constant 0 : i32
    %c0_i32_1 = arith.constant 0 : i32
    return %c0_i32, %c0_i32_0 : i32, i32
  }
  func.func @transform_2(%arg0: i32) -> (i32, i32) {
    %c0_i32 = arith.constant 0 : i32
    %c0_i32_0 = arith.constant 0 : i32
    %c0_i32_1 = arith.constant 0 : i32
    return %c0_i32, %c0_i32_0 : i32, i32
  }
  func.func @transform_3(%arg0: i32) -> (i32, i32) {
    %c0_i32 = arith.constant 0 : i32
    %c0_i32_0 = arith.constant 0 : i32
    %c0_i32_1 = arith.constant 0 : i32
    return %c0_i32, %c0_i32_0 : i32, i32
  }
  func.func @transform_4(%arg0: i32) -> (i32, i32) {
    %c0_i32 = arith.constant 0 : i32
    %c0_i32_0 = arith.constant 0 : i32
    %c0_i32_1 = arith.constant 0 : i32
    return %c0_i32, %c0_i32_0 : i32, i32
  }
  func.func @transform_5(%arg0: i32) -> (i32, i32) {
    %c0_i32 = arith.constant 0 : i32
    %c0_i32_0 = arith.constant 0 : i32
    return %arg0, %c0_i32 : i32, i32
  }
}

</mosaic_0001>

<llo_original>
// kernel: net_forward.1
$region0: #{net_forward.1}
  #allocation0 [shape = 'u32[]', space=smem, size = 0x4, offset = 0x4, fixed_abs, tag = 'smem constant byte address 0x4 - core index']
  #allocation1 [shape = 'u32[144,128]{1,0:T(1,128)}', space=vmem, size = 0x12000, scoped, tag = 'internal scratch']
  %s0 = inlined_call_operand.vmem [shape: f32[8,16], index: 0, kind: input, shape index: {}]
  %s1 = inlined_call_operand.vmem [shape: f32[16,32], index: 1, kind: input, shape index: {}]
  %s2 = inlined_call_operand.vmem [shape: f32[1,32], index: 2, kind: input, shape index: {}]
  %s3 = inlined_call_operand.vmem [shape: f32[32,8], index: 3, kind: input, shape index: {}]
  %s4 = inlined_call_operand.vmem [shape: f32[1,8], index: 4, kind: input, shape index: {}]
  %s5 = inlined_call_operand.hbm [shape: f32[8,8], index: 5, kind: output, shape index: {}]
  %s6 = sld [smem:[#allocation0]]
  $region30: #{net_forward.1} parent=0
    _
  %s8 = ssub.s32 1, %s6
  %s9 = scalar_select 0, %s8, %s6
  $region1: #{net_forward.1} parent=0
    #allocation2 [shape = 'u8[4096]{0}', space=vmem, size = 0x1000, scoped, tag = 'output window, operand 0, single buffered']
    #allocation3 [shape = 's32[1]{0}', space=sflag, size = 0x4, scoped, tag = 'scoped memory for net_forward.1']
    %10 = vsyncpa [#allocation3], 0
    // Predicated region
    $region2: #{net_forward.1} parent=1 // pred_check
      _
    $region3: #{net_forward.1} parent=1 // pred_check_branch
      %12 = sbr.rel (0) target = $region5
    $region4: #{net_forward.1} parent=1 // pred_region
      _
    $region5: #{net_forward.1} parent=1 // pred_fallthru
      _
    // Predicated region
    $region6: #{net_forward.1} parent=1 // pred_check
      _
    $region7: #{net_forward.1} parent=1 // pred_check_branch
      %14 = sbr.rel (0) target = $region9
    $region8: #{net_forward.1} parent=1 // pred_region
      _
    $region9: #{net_forward.1} parent=1 // pred_fallthru
      _
    // Predicated region
    $region10: #{net_forward.1} parent=1 // pred_check
      _
    $region11: #{net_forward.1} parent=1 // pred_check_branch
      %16 = sbr.rel (0) target = $region13
    $region12: #{net_forward.1} parent=1 // pred_region
      _
    $region13: #{net_forward.1} parent=1 // pred_fallthru
      _
    // Predicated region
    $region14: #{net_forward.1} parent=1 // pred_check
      _
    $region15: #{net_forward.1} parent=1 // pred_check_branch
      %18 = sbr.rel (0) target = $region17
    $region16: #{net_forward.1} parent=1 // pred_region
      _
    $region17: #{net_forward.1} parent=1 // pred_fallthru
      _
    // Predicated region
    $region18: #{net_forward.1} parent=1 // pred_check
      _
    $region19: #{net_forward.1} parent=1 // pred_check_branch
      %20 = sbr.rel (0) target = $region21
    $region20: #{net_forward.1} parent=1 // pred_region
      _
    $region21: #{net_forward.1} parent=1 // pred_fallthru
      _
    %v21 = vld [vmem:[%s0] sm:$0xff]
    %v22 = vld [vmem:[%s1] sm:$0xff]
    %v23 = vld [vmem:[%s1 + $0x8] sm:$0xff]
    %v24 = vld [vmem:[%s2] sm:$0x1]
    %v26 = vlaneseq
    %v27 = vshrl.u32 %v26, 7
    %v28 = vsub.s32 0, %v27
    %v29 = vrot.slane %v24, %v28
    %vm31 = vcmask 130048
    %v33 = vsel %vm31, %v21, 0
    %35 = vmatprep.subr.mxu0 0.0
    %36 = vmatpush1.msra.mxu0 0.0
    %37 = vmatprep.subr.mxu0 0.0
    %38 = vmatpush1.msra.mxu0 0.0
    %39 = vmatprep.subr.mxu0 0.0
    %40 = vmatpush1.msra.mxu0 0.0
    %41 = vmatprep.subr.mxu0 0.0
    %42 = vmatpush1.msra.mxu0 0.0
    %43 = vmatprep.subr.mxu0 0.0
    %44 = vmatpush1.msra.mxu0 0.0
    %45 = vmatprep.subr.mxu0 0.0
    %46 = vmatpush1.msra.mxu0 0.0
    %47 = vmatprep.subr.mxu0 0.0
    %48 = vmatpush1.msra.mxu0 0.0
    %49 = vmatprep.subr.mxu0 0.0
    %50 = vmatpush1.msra.mxu0 0.0
    %51 = vmatprep.subr.mxu0 0.0
    %52 = vmatpush1.msra.mxu0 0.0
    %53 = vmatprep.subr.mxu0 0.0
    %54 = vmatpush1.msra.mxu0 0.0
    %55 = vmatprep.subr.mxu0 0.0
    %56 = vmatpush1.msra.mxu0 0.0
    %57 = vmatprep.subr.mxu0 0.0
    %58 = vmatpush1.msra.mxu0 0.0
    %59 = vmatprep.subr.mxu0 0.0
    %60 = vmatpush1.msra.mxu0 0.0
    %61 = vmatprep.subr.mxu0 0.0
    %62 = vmatpush1.msra.mxu0 0.0
    %63 = vmatprep.subr.mxu0 0.0
    %v64 = vand.u32 %v23, 4294901760
    %65 = vmatpush1.msra.mxu0 %v64
    %66 = vmatprep.subr.mxu0 0.0
    %v67 = vand.u32 %v22, 4294901760
    %68 = vmatpush1.msra.mxu0 %v67
    %69 = vmatprep.subr.mxu0 0.0
    %70 = vmatpush2.msra.mxu0 0.0
    %71 = vmatprep.subr.mxu0 0.0
    %72 = vmatpush2.msra.mxu0 0.0
    %73 = vmatprep.subr.mxu0 0.0
    %74 = vmatpush2.msra.mxu0 0.0
    %75 = vmatprep.subr.mxu0 0.0
    %76 = vmatpush2.msra.mxu0 0.0
    %77 = vmatprep.subr.mxu0 0.0
    %78 = vmatpush2.msra.mxu0 0.0
    %79 = vmatprep.subr.mxu0 0.0
    %80 = vmatpush2.msra.mxu0 0.0
    %81 = vmatprep.subr.mxu0 0.0
    %82 = vmatpush2.msra.mxu0 0.0
    %83 = vmatprep.subr.mxu0 0.0
    %84 = vmatpush2.msra.mxu0 0.0
    %85 = vmatprep.subr.mxu0 0.0
    %86 = vmatpush2.msra.mxu0 0.0
    %87 = vmatprep.subr.mxu0 0.0
    %88 = vmatpush2.msra.mxu0 0.0
    %89 = vmatprep.subr.mxu0 0.0
    %90 = vmatpush2.msra.mxu0 0.0
    %91 = vmatprep.subr.mxu0 0.0
    %92 = vmatpush2.msra.mxu0 0.0
    %93 = vmatprep.subr.mxu0 0.0
    %94 = vmatpush2.msra.mxu0 0.0
    %95 = vmatprep.subr.mxu0 0.0
    %96 = vmatpush2.msra.mxu0 0.0
    %97 = vmatprep.subr.mxu0 0.0
    %98 = vmatpush2.msra.mxu0 0.0
    %99 = vmatprep.subr.mxu0 0.0
    %100 = vmatpush2.msra.mxu0 0.0
    %101 = vmatprep.mubr.f32.mxu0 0.0
    %v102 = vand.u32 %v33, 4294901760
    %v103 = vsub.f32 %v33, %v102
    %v104 = vand.u32 %v103, 4294901760
    %v105 = vsub.f32 %v103, %v104
    %v106 = vand.u32 %v105, 4294901760
    %107 = vmatmul.mubr.f32.gmra.mxu0 %v106
    %v108 = vpop.f32.mrf.mxu0
    %v109 = vadd.f32 %v29, %v108
    %v110 = vpop.f32.mrf.mxu0
    %111 = vdwg.mxu0
    %112 = vmatprep.subr.mxu0 0.0
    %113 = vmatpush1.msra.mxu0 0.0
    %114 = vmatprep.subr.mxu0 0.0
    %115 = vmatpush1.msra.mxu0 0.0
    %116 = vmatprep.subr.mxu0 0.0
    %117 = vmatpush1.msra.mxu0 0.0
    %118 = vmatprep.subr.mxu0 0.0
    %119 = vmatpush1.msra.mxu0 0.0
    %120 = vmatprep.subr.mxu0 0.0
    %121 = vmatpush1.msra.mxu0 0.0
    %122 = vmatprep.subr.mxu0 0.0
    %123 = vmatpush1.msra.mxu0 0.0
    %124 = vmatprep.subr.mxu0 0.0
    %125 = vmatpush1.msra.mxu0 0.0
    %126 = vmatprep.subr.mxu0 0.0
    %127 = vmatpush1.msra.mxu0 0.0
    %128 = vmatprep.subr.mxu0 0.0
    %129 = vmatpush1.msra.mxu0 0.0
    %130 = vmatprep.subr.mxu0 0.0
    %131 = vmatpush1.msra.mxu0 0.0
    %132 = vmatprep.subr.mxu0 0.0
    %133 = vmatpush1.msra.mxu0 0.0
    %134 = vmatprep.subr.mxu0 0.0
    %135 = vmatpush1.msra.mxu0 0.0
    %136 = vmatprep.subr.mxu0 0.0
    %137 = vmatpush1.msra.mxu0 0.0
    %138 = vmatprep.subr.mxu0 0.0
    %139 = vmatpush1.msra.mxu0 0.0
    %140 = vmatprep.subr.mxu0 0.0
    %v141 = vand.u32 %v23, 4294901760
    %v142 = vsub.f32 %v23, %v141
    %v143 = vand.u32 %v142, 4294901760
    %v144 = vsub.f32 %v142, %v143
    %v145 = vand.u32 %v144, 4294901760
    %146 = vmatpush1.msra.mxu0 %v145
    %147 = vmatprep.subr.mxu0 0.0
    %v148 = vand.u32 %v22, 4294901760
    %v149 = vsub.f32 %v22, %v148
    %v150 = vand.u32 %v149, 4294901760
    %v151 = vsub.f32 %v149, %v150
    %v152 = vand.u32 %v151, 4294901760
    %153 = vmatpush1.msra.mxu0 %v152
    %154 = vmatprep.subr.mxu0 0.0
    %155 = vmatpush2.msra.mxu0 0.0
    %156 = vmatprep.subr.mxu0 0.0
    %157 = vmatpush2.msra.mxu0 0.0
    %158 = vmatprep.subr.mxu0 0.0
    %159 = vmatpush2.msra.mxu0 0.0
    %160 = vmatprep.subr.mxu0 0.0
    %161 = vmatpush2.msra.mxu0 0.0
    %162 = vmatprep.subr.mxu0 0.0
    %163 = vmatpush2.msra.mxu0 0.0
    %164 = vmatprep.subr.mxu0 0.0
    %165 = vmatpush2.msra.mxu0 0.0
    %166 = vmatprep.subr.mxu0 0.0
    %167 = vmatpush2.msra.mxu0 0.0
    %168 = vmatprep.subr.mxu0 0.0
    %169 = vmatpush2.msra.mxu0 0.0
    %170 = vmatprep.subr.mxu0 0.0
    %171 = vmatpush2.msra.mxu0 0.0
    %172 = vmatprep.subr.mxu0 0.0
    %173 = vmatpush2.msra.mxu0 0.0
    %174 = vmatprep.subr.mxu0 0.0
    %175 = vmatpush2.msra.mxu0 0.0
    %176 = vmatprep.subr.mxu0 0.0
    %177 = vmatpush2.msra.mxu0 0.0
    %178 = vmatprep.subr.mxu0 0.0
    %179 = vmatpush2.msra.mxu0 0.0
    %180 = vmatprep.subr.mxu0 0.0
    %181 = vmatpush2.msra.mxu0 0.0
    %182 = vmatprep.subr.mxu0 0.0
    %183 = vmatpush2.msra.mxu0 0.0
    %184 = vmatprep.subr.mxu0 0.0
    %185 = vmatpush2.msra.mxu0 0.0
    %186 = vmatprep.mubr.f32.mxu0 0.0
    %v187 = vand.u32 %v33, 4294901760
    %188 = vmatmul.mubr.f32.gmra.mxu0 %v187
    %v189 = vpop.f32.mrf.mxu0
    %v190 = vadd.f32 %v109, %v189
    %v191 = vpop.f32.mrf.mxu0
    %192 = vdwg.mxu0
    %193 = vmatprep.subr.mxu0 0.0
    %194 = vmatpush1.msra.mxu0 0.0
    %195 = vmatprep.subr.mxu0 0.0
    %196 = vmatpush1.msra.mxu0 0.0
    %197 = vmatprep.subr.mxu0 0.0
    %198 = vmatpush1.msra.mxu0 0.0
    %199 = vmatprep.subr.mxu0 0.0
    %200 = vmatpush1.msra.mxu0 0.0
    %201 = vmatprep.subr.mxu0 0.0
    %202 = vmatpush1.msra.mxu0 0.0
    %203 = vmatprep.subr.mxu0 0.0
    %204 = vmatpush1.msra.mxu0 0.0
    %205 = vmatprep.subr.mxu0 0.0
    %206 = vmatpush1.msra.mxu0 0.0
    %207 = vmatprep.subr.mxu0 0.0
    %208 = vmatpush1.msra.mxu0 0.0
    %209 = vmatprep.subr.mxu0 0.0
    %210 = vmatpush1.msra.mxu0 0.0
    %211 = vmatprep.subr.mxu0 0.0
    %212 = vmatpush1.msra.mxu0 0.0
    %213 = vmatprep.subr.mxu0 0.0
    %214 = vmatpush1.msra.mxu0 0.0
    %215 = vmatprep.subr.mxu0 0.0
    %216 = vmatpush1.msra.mxu0 0.0
    %217 = vmatprep.subr.mxu0 0.0
    %218 = vmatpush1.msra.mxu0 0.0
    %219 = vmatprep.subr.mxu0 0.0
    %220 = vmatpush1.msra.mxu0 0.0
    %221 = vmatprep.subr.mxu0 0.0
    %v222 = vand.u32 %v23, 4294901760
    %v223 = vsub.f32 %v23, %v222
    %224 = vmatpush1.msra.mxu0 %v223
    %225 = vmatprep.subr.mxu0 0.0
    %v226 = vand.u32 %v22, 4294901760
    %v227 = vsub.f32 %v22, %v226
    %228 = vmatpush1.msra.mxu0 %v227
    %229 = vmatprep.subr.mxu0 0.0
    %230 = vmatpush2.msra.mxu0 0.0
    %231 = vmatprep.subr.mxu0 0.0
    %232 = vmatpush2.msra.mxu0 0.0
    %233 = vmatprep.subr.mxu0 0.0
    %234 = vmatpush2.msra.mxu0 0.0
    %235 = vmatprep.subr.mxu0 0.0
    %236 = vmatpush2.msra.mxu0 0.0
    %237 = vmatprep.subr.mxu0 0.0
    %238 = vmatpush2.msra.mxu0 0.0
    %239 = vmatprep.subr.mxu0 0.0
    %240 = vmatpush2.msra.mxu0 0.0
    %241 = vmatprep.subr.mxu0 0.0
    %242 = vmatpush2.msra.mxu0 0.0
    %243 = vmatprep.subr.mxu0 0.0
    %244 = vmatpush2.msra.mxu0 0.0
    %245 = vmatprep.subr.mxu0 0.0
    %246 = vmatpush2.msra.mxu0 0.0
    %247 = vmatprep.subr.mxu0 0.0
    %248 = vmatpush2.msra.mxu0 0.0
    %249 = vmatprep.subr.mxu0 0.0
    %250 = vmatpush2.msra.mxu0 0.0
    %251 = vmatprep.subr.mxu0 0.0
    %252 = vmatpush2.msra.mxu0 0.0
    %253 = vmatprep.subr.mxu0 0.0
    %254 = vmatpush2.msra.mxu0 0.0
    %255 = vmatprep.subr.mxu0 0.0
    %256 = vmatpush2.msra.mxu0 0.0
    %257 = vmatprep.subr.mxu0 0.0
    %258 = vmatpush2.msra.mxu0 0.0
    %259 = vmatprep.subr.mxu0 0.0
    %260 = vmatpush2.msra.mxu0 0.0
    %261 = vmatprep.mubr.f32.mxu0 0.0
    %v262 = vand.u32 %v33, 4294901760
    %v263 = vsub.f32 %v33, %v262
    %264 = vmatmul.mubr.f32.gmra.mxu0 %v263
    %v265 = vpop.f32.mrf.mxu0
    %v266 = vadd.f32 %v190, %v265
    %v267 = vpop.f32.mrf.mxu0
    %268 = vdwg.mxu0
    %269 = vmatprep.subr.mxu0 0.0
    %270 = vmatpush1.msra.mxu0 0.0
    %271 = vmatprep.subr.mxu0 0.0
    %272 = vmatpush1.msra.mxu0 0.0
    %273 = vmatprep.subr.mxu0 0.0
    %274 = vmatpush1.msra.mxu0 0.0
    %275 = vmatprep.subr.mxu0 0.0
    %276 = vmatpush1.msra.mxu0 0.0
    %277 = vmatprep.subr.mxu0 0.0
    %278 = vmatpush1.msra.mxu0 0.0
    %279 = vmatprep.subr.mxu0 0.0
    %280 = vmatpush1.msra.mxu0 0.0
    %281 = vmatprep.subr.mxu0 0.0
    %282 = vmatpush1.msra.mxu0 0.0
    %283 = vmatprep.subr.mxu0 0.0
    %284 = vmatpush1.msra.mxu0 0.0
    %285 = vmatprep.subr.mxu0 0.0
    %286 = vmatpush1.msra.mxu0 0.0
    %287 = vmatprep.subr.mxu0 0.0
    %288 = vmatpush1.msra.mxu0 0.0
    %289 = vmatprep.subr.mxu0 0.0
    %290 = vmatpush1.msra.mxu0 0.0
    %291 = vmatprep.subr.mxu0 0.0
    %292 = vmatpush1.msra.mxu0 0.0
    %293 = vmatprep.subr.mxu0 0.0
    %294 = vmatpush1.msra.mxu0 0.0
    %295 = vmatprep.subr.mxu0 0.0
    %296 = vmatpush1.msra.mxu0 0.0
    %297 = vmatprep.subr.mxu0 0.0
    %v298 = vand.u32 %v23, 4294901760
    %299 = vmatpush1.msra.mxu0 %v298
    %300 = vmatprep.subr.mxu0 0.0
    %v301 = vand.u32 %v22, 4294901760
    %302 = vmatpush1.msra.mxu0 %v301
    %303 = vmatprep.subr.mxu0 0.0
    %304 = vmatpush2.msra.mxu0 0.0
    %305 = vmatprep.subr.mxu0 0.0
    %306 = vmatpush2.msra.mxu0 0.0
    %307 = vmatprep.subr.mxu0 0.0
    %308 = vmatpush2.msra.mxu0 0.0
    %309 = vmatprep.subr.mxu0 0.0
    %310 = vmatpush2.msra.mxu0 0.0
    %311 = vmatprep.subr.mxu0 0.0
    %312 = vmatpush2.msra.mxu0 0.0
    %313 = vmatprep.subr.mxu0 0.0
    %314 = vmatpush2.msra.mxu0 0.0
    %315 = vmatprep.subr.mxu0 0.0
    %316 = vmatpush2.msra.mxu0 0.0
    %317 = vmatprep.subr.mxu0 0.0
    %318 = vmatpush2.msra.mxu0 0.0
    %319 = vmatprep.subr.mxu0 0.0
    %320 = vmatpush2.msra.mxu0 0.0
    %321 = vmatprep.subr.mxu0 0.0
    %322 = vmatpush2.msra.mxu0 0.0
    %323 = vmatprep.subr.mxu0 0.0
    %324 = vmatpush2.msra.mxu0 0.0
    %325 = vmatprep.subr.mxu0 0.0
    %326 = vmatpush2.msra.mxu0 0.0
    %327 = vmatprep.subr.mxu0 0.0
    %328 = vmatpush2.msra.mxu0 0.0
    %329 = vmatprep.subr.mxu0 0.0
    %330 = vmatpush2.msra.mxu0 0.0
    %331 = vmatprep.subr.mxu0 0.0
    %332 = vmatpush2.msra.mxu0 0.0
    %333 = vmatprep.subr.mxu0 0.0
    %334 = vmatpush2.msra.mxu0 0.0
    %335 = vmatprep.mubr.f32.mxu0 0.0
    %v336 = vand.u32 %v33, 4294901760
    %v337 = vsub.f32 %v33, %v336
    %v338 = vand.u32 %v337, 4294901760
    %339 = vmatmul.mubr.f32.gmra.mxu0 %v338
    %v340 = vpop.f32.mrf.mxu0
    %v341 = vadd.f32 %v266, %v340
    %v342 = vpop.f32.mrf.mxu0
    %343 = vdwg.mxu0
    %344 = vmatprep.subr.mxu0 0.0
    %345 = vmatpush1.msra.mxu0 0.0
    %346 = vmatprep.subr.mxu0 0.0
    %347 = vmatpush1.msra.mxu0 0.0
    %348 = vmatprep.subr.mxu0 0.0
    %349 = vmatpush1.msra.mxu0 0.0
    %350 = vmatprep.subr.mxu0 0.0
    %351 = vmatpush1.msra.mxu0 0.0
    %352 = vmatprep.subr.mxu0 0.0
    %353 = vmatpush1.msra.mxu0 0.0
    %354 = vmatprep.subr.mxu0 0.0
    %355 = vmatpush1.msra.mxu0 0.0
    %356 = vmatprep.subr.mxu0 0.0
    %357 = vmatpush1.msra.mxu0 0.0
    %358 = vmatprep.subr.mxu0 0.0
    %359 = vmatpush1.msra.mxu0 0.0
    %360 = vmatprep.subr.mxu0 0.0
    %361 = vmatpush1.msra.mxu0 0.0
    %362 = vmatprep.subr.mxu0 0.0
    %363 = vmatpush1.msra.mxu0 0.0
    %364 = vmatprep.subr.mxu0 0.0
    %365 = vmatpush1.msra.mxu0 0.0
    %366 = vmatprep.subr.mxu0 0.0
    %367 = vmatpush1.msra.mxu0 0.0
    %368 = vmatprep.subr.mxu0 0.0
    %369 = vmatpush1.msra.mxu0 0.0
    %370 = vmatprep.subr.mxu0 0.0
    %371 = vmatpush1.msra.mxu0 0.0
    %372 = vmatprep.subr.mxu0 0.0
    %v373 = vand.u32 %v23, 4294901760
    %v374 = vsub.f32 %v23, %v373
    %v375 = vand.u32 %v374, 4294901760
    %376 = vmatpush1.msra.mxu0 %v375
    %377 = vmatprep.subr.mxu0 0.0
    %v378 = vand.u32 %v22, 4294901760
    %v379 = vsub.f32 %v22, %v378
    %v380 = vand.u32 %v379, 4294901760
    %381 = vmatpush1.msra.mxu0 %v380
    %382 = vmatprep.subr.mxu0 0.0
    %383 = vmatpush2.msra.mxu0 0.0
    %384 = vmatprep.subr.mxu0 0.0
    %385 = vmatpush2.msra.mxu0 0.0
    %386 = vmatprep.subr.mxu0 0.0
    %387 = vmatpush2.msra.mxu0 0.0
    %388 = vmatprep.subr.mxu0 0.0
    %389 = vmatpush2.msra.mxu0 0.0
    %390 = vmatprep.subr.mxu0 0.0
    %391 = vmatpush2.msra.mxu0 0.0
    %392 = vmatprep.subr.mxu0 0.0
    %393 = vmatpush2.msra.mxu0 0.0
    %394 = vmatprep.subr.mxu0 0.0
    %395 = vmatpush2.msra.mxu0 0.0
    %396 = vmatprep.subr.mxu0 0.0
    %397 = vmatpush2.msra.mxu0 0.0
    %398 = vmatprep.subr.mxu0 0.0
    %399 = vmatpush2.msra.mxu0 0.0
    %400 = vmatprep.subr.mxu0 0.0
    %401 = vmatpush2.msra.mxu0 0.0
    %402 = vmatprep.subr.mxu0 0.0
    %403 = vmatpush2.msra.mxu0 0.0
    %404 = vmatprep.subr.mxu0 0.0
    %405 = vmatpush2.msra.mxu0 0.0
    %406 = vmatprep.subr.mxu0 0.0
    %407 = vmatpush2.msra.mxu0 0.0
    %408 = vmatprep.subr.mxu0 0.0
    %409 = vmatpush2.msra.mxu0 0.0
    %410 = vmatprep.subr.mxu0 0.0
    %411 = vmatpush2.msra.mxu0 0.0
    %412 = vmatprep.subr.mxu0 0.0
    %413 = vmatpush2.msra.mxu0 0.0
    %414 = vmatprep.mubr.f32.mxu0 0.0
    %v415 = vand.u32 %v33, 4294901760
    %416 = vmatmul.mubr.f32.gmra.mxu0 %v415
    %v417 = vpop.f32.mrf.mxu0
    %v418 = vadd.f32 %v341, %v417
    %v419 = vpop.f32.mrf.mxu0
    %420 = vdwg.mxu0
    %421 = vmatprep.subr.mxu0 0.0
    %422 = vmatpush1.msra.mxu0 0.0
    %423 = vmatprep.subr.mxu0 0.0
    %424 = vmatpush1.msra.mxu0 0.0
    %425 = vmatprep.subr.mxu0 0.0
    %426 = vmatpush1.msra.mxu0 0.0
    %427 = vmatprep.subr.mxu0 0.0
    %428 = vmatpush1.msra.mxu0 0.0
    %429 = vmatprep.subr.mxu0 0.0
    %430 = vmatpush1.msra.mxu0 0.0
    %431 = vmatprep.subr.mxu0 0.0
    %432 = vmatpush1.msra.mxu0 0.0
    %433 = vmatprep.subr.mxu0 0.0
    %434 = vmatpush1.msra.mxu0 0.0
    %435 = vmatprep.subr.mxu0 0.0
    %436 = vmatpush1.msra.mxu0 0.0
    %437 = vmatprep.subr.mxu0 0.0
    %438 = vmatpush1.msra.mxu0 0.0
    %439 = vmatprep.subr.mxu0 0.0
    %440 = vmatpush1.msra.mxu0 0.0
    %441 = vmatprep.subr.mxu0 0.0
    %442 = vmatpush1.msra.mxu0 0.0
    %443 = vmatprep.subr.mxu0 0.0
    %444 = vmatpush1.msra.mxu0 0.0
    %445 = vmatprep.subr.mxu0 0.0
    %446 = vmatpush1.msra.mxu0 0.0
    %447 = vmatprep.subr.mxu0 0.0
    %448 = vmatpush1.msra.mxu0 0.0
    %449 = vmatprep.subr.mxu0 0.0
    %v450 = vand.u32 %v23, 4294901760
    %451 = vmatpush1.msra.mxu0 %v450
    %452 = vmatprep.subr.mxu0 0.0
    %v453 = vand.u32 %v22, 4294901760
    %454 = vmatpush1.msra.mxu0 %v453
    %455 = vmatprep.subr.mxu0 0.0
    %456 = vmatpush2.msra.mxu0 0.0
    %457 = vmatprep.subr.mxu0 0.0
    %458 = vmatpush2.msra.mxu0 0.0
    %459 = vmatprep.subr.mxu0 0.0
    %460 = vmatpush2.msra.mxu0 0.0
    %461 = vmatprep.subr.mxu0 0.0
    %462 = vmatpush2.msra.mxu0 0.0
    %463 = vmatprep.subr.mxu0 0.0
    %464 = vmatpush2.msra.mxu0 0.0
    %465 = vmatprep.subr.mxu0 0.0
    %466 = vmatpush2.msra.mxu0 0.0
    %467 = vmatprep.subr.mxu0 0.0
    %468 = vmatpush2.msra.mxu0 0.0
    %469 = vmatprep.subr.mxu0 0.0
    %470 = vmatpush2.msra.mxu0 0.0
    %471 = vmatprep.subr.mxu0 0.0
    %472 = vmatpush2.msra.mxu0 0.0
    %473 = vmatprep.subr.mxu0 0.0
    %474 = vmatpush2.msra.mxu0 0.0
    %475 = vmatprep.subr.mxu0 0.0
    %476 = vmatpush2.msra.mxu0 0.0
    %477 = vmatprep.subr.mxu0 0.0
    %478 = vmatpush2.msra.mxu0 0.0
    %479 = vmatprep.subr.mxu0 0.0
    %480 = vmatpush2.msra.mxu0 0.0
    %481 = vmatprep.subr.mxu0 0.0
    %482 = vmatpush2.msra.mxu0 0.0
    %483 = vmatprep.subr.mxu0 0.0
    %484 = vmatpush2.msra.mxu0 0.0
    %485 = vmatprep.subr.mxu0 0.0
    %486 = vmatpush2.msra.mxu0 0.0
    %487 = vmatprep.mubr.f32.mxu0 0.0
    %v488 = vand.u32 %v33, 4294901760
    %489 = vmatmul.mubr.f32.gmra.mxu0 %v488
    %v490 = vpop.f32.mrf.mxu0
    %v491 = vadd.f32 %v418, %v490
    %v492 = vpop.f32.mrf.mxu0
    %493 = vdwg.mxu0
    %v494 = vxor.u32 %v491, 2147483648
    %v495 = vmul.f32 %v494, 1.442695
    %v496 = vpow.pop %v495
    %v497 = vadd.f32 %v496, 1.0
    %v498 = vrcp.pop %v497
    %v499 = vmul.f32 1.0, %v498
    %v500 = vld [vmem:[%s3] sm:$0xff]
    %v501 = vld [vmem:[%s3 + $0x8] sm:$0xff]
    %v502 = vld [vmem:[%s3 + $0x10] sm:$0xff]
    %v503 = vld [vmem:[%s3 + $0x18] sm:$0xff]
    %v504 = vld [vmem:[%s4] sm:$0x1]
    %v506 = vlaneseq
    %v507 = vshrl.u32 %v506, 7
    %v508 = vsub.s32 0, %v507
    %v509 = vrot.slane %v504, %v508
    %vm511 = vcmask 261120
    %v513 = vsel %vm511, %v499, 0
    %515 = vmatprep.subr.mxu0 0.0
    %516 = vmatpush1.msra.mxu0 0.0
    %517 = vmatprep.subr.mxu0 0.0
    %518 = vmatpush1.msra.mxu0 0.0
    %519 = vmatprep.subr.mxu0 0.0
    %520 = vmatpush1.msra.mxu0 0.0
    %521 = vmatprep.subr.mxu0 0.0
    %522 = vmatpush1.msra.mxu0 0.0
    %523 = vmatprep.subr.mxu0 0.0
    %524 = vmatpush1.msra.mxu0 0.0
    %525 = vmatprep.subr.mxu0 0.0
    %526 = vmatpush1.msra.mxu0 0.0
    %527 = vmatprep.subr.mxu0 0.0
    %528 = vmatpush1.msra.mxu0 0.0
    %529 = vmatprep.subr.mxu0 0.0
    %530 = vmatpush1.msra.mxu0 0.0
    %531 = vmatprep.subr.mxu0 0.0
    %532 = vmatpush1.msra.mxu0 0.0
    %533 = vmatprep.subr.mxu0 0.0
    %534 = vmatpush1.msra.mxu0 0.0
    %535 = vmatprep.subr.mxu0 0.0
    %536 = vmatpush1.msra.mxu0 0.0
    %537 = vmatprep.subr.mxu0 0.0
    %538 = vmatpush1.msra.mxu0 0.0
    %539 = vmatprep.subr.mxu0 0.0
    %v540 = vand.u32 %v503, 4294901760
    %541 = vmatpush1.msra.mxu0 %v540
    %542 = vmatprep.subr.mxu0 0.0
    %v543 = vand.u32 %v502, 4294901760
    %544 = vmatpush1.msra.mxu0 %v543
    %545 = vmatprep.subr.mxu0 0.0
    %v546 = vand.u32 %v501, 4294901760
    %547 = vmatpush1.msra.mxu0 %v546
    %548 = vmatprep.subr.mxu0 0.0
    %v549 = vand.u32 %v500, 4294901760
    %550 = vmatpush1.msra.mxu0 %v549
    %551 = vmatprep.subr.mxu0 0.0
    %552 = vmatpush2.msra.mxu0 0.0
    %553 = vmatprep.subr.mxu0 0.0
    %554 = vmatpush2.msra.mxu0 0.0
    %555 = vmatprep.subr.mxu0 0.0
    %556 = vmatpush2.msra.mxu0 0.0
    %557 = vmatprep.subr.mxu0 0.0
    %558 = vmatpush2.msra.mxu0 0.0
    %559 = vmatprep.subr.mxu0 0.0
    %560 = vmatpush2.msra.mxu0 0.0
    %561 = vmatprep.subr.mxu0 0.0
    %562 = vmatpush2.msra.mxu0 0.0
    %563 = vmatprep.subr.mxu0 0.0
    %564 = vmatpush2.msra.mxu0 0.0
    %565 = vmatprep.subr.mxu0 0.0
    %566 = vmatpush2.msra.mxu0 0.0
    %567 = vmatprep.subr.mxu0 0.0
    %568 = vmatpush2.msra.mxu0 0.0
    %569 = vmatprep.subr.mxu0 0.0
    %570 = vmatpush2.msra.mxu0 0.0
    %571 = vmatprep.subr.mxu0 0.0
    %572 = vmatpush2.msra.mxu0 0.0
    %573 = vmatprep.subr.mxu0 0.0
    %574 = vmatpush2.msra.mxu0 0.0
    %575 = vmatprep.subr.mxu0 0.0
    %576 = vmatpush2.msra.mxu0 0.0
    %577 = vmatprep.subr.mxu0 0.0
    %578 = vmatpush2.msra.mxu0 0.0
    %579 = vmatprep.subr.mxu0 0.0
    %580 = vmatpush2.msra.mxu0 0.0
    %581 = vmatprep.subr.mxu0 0.0
    %582 = vmatpush2.msra.mxu0 0.0
    %583 = vmatprep.mubr.f32.mxu0 0.0
    %v584 = vand.u32 %v513, 4294901760
    %v585 = vsub.f32 %v513, %v584
    %v586 = vand.u32 %v585, 4294901760
    %v587 = vsub.f32 %v585, %v586
    %v588 = vand.u32 %v587, 4294901760
    %589 = vmatmul.mubr.f32.gmra.mxu0 %v588
    %v590 = vpop.f32.mrf.mxu0
    %v591 = vadd.f32 %v509, %v590
    %v592 = vpop.f32.mrf.mxu0
    %593 = vdwg.mxu0
    %594 = vmatprep.subr.mxu0 0.0
    %595 = vmatpush1.msra.mxu0 0.0
    %596 = vmatprep.subr.mxu0 0.0
    %597 = vmatpush1.msra.mxu0 0.0
    %598 = vmatprep.subr.mxu0 0.0
    %599 = vmatpush1.msra.mxu0 0.0
    %600 = vmatprep.subr.mxu0 0.0
    %601 = vmatpush1.msra.mxu0 0.0
    %602 = vmatprep.subr.mxu0 0.0
    %603 = vmatpush1.msra.mxu0 0.0
    %604 = vmatprep.subr.mxu0 0.0
    %605 = vmatpush1.msra.mxu0 0.0
    %606 = vmatprep.subr.mxu0 0.0
    %607 = vmatpush1.msra.mxu0 0.0
    %608 = vmatprep.subr.mxu0 0.0
    %609 = vmatpush1.msra.mxu0 0.0
    %610 = vmatprep.subr.mxu0 0.0
    %611 = vmatpush1.msra.mxu0 0.0
    %612 = vmatprep.subr.mxu0 0.0
    %613 = vmatpush1.msra.mxu0 0.0
    %614 = vmatprep.subr.mxu0 0.0
    %615 = vmatpush1.msra.mxu0 0.0
    %616 = vmatprep.subr.mxu0 0.0
    %617 = vmatpush1.msra.mxu0 0.0
    %618 = vmatprep.subr.mxu0 0.0
    %v619 = vand.u32 %v503, 4294901760
    %v620 = vsub.f32 %v503, %v619
    %v621 = vand.u32 %v620, 4294901760
    %v622 = vsub.f32 %v620, %v621
    %v623 = vand.u32 %v622, 4294901760
    %624 = vmatpush1.msra.mxu0 %v623
    %625 = vmatprep.subr.mxu0 0.0
    %v626 = vand.u32 %v502, 4294901760
    %v627 = vsub.f32 %v502, %v626
    %v628 = vand.u32 %v627, 4294901760
    %v629 = vsub.f32 %v627, %v628
    %v630 = vand.u32 %v629, 4294901760
    %631 = vmatpush1.msra.mxu0 %v630
    %632 = vmatprep.subr.mxu0 0.0
    %v633 = vand.u32 %v501, 4294901760
    %v634 = vsub.f32 %v501, %v633
    %v635 = vand.u32 %v634, 4294901760
    %v636 = vsub.f32 %v634, %v635
    %v637 = vand.u32 %v636, 4294901760
    %638 = vmatpush1.msra.mxu0 %v637
    %639 = vmatprep.subr.mxu0 0.0
    %v640 = vand.u32 %v500, 4294901760
    %v641 = vsub.f32 %v500, %v640
    %v642 = vand.u32 %v641, 4294901760
    %v643 = vsub.f32 %v641, %v642
    %v644 = vand.u32 %v643, 4294901760
    %645 = vmatpush1.msra.mxu0 %v644
    %646 = vmatprep.subr.mxu0 0.0
    %647 = vmatpush2.msra.mxu0 0.0
    %648 = vmatprep.subr.mxu0 0.0
    %649 = vmatpush2.msra.mxu0 0.0
    %650 = vmatprep.subr.mxu0 0.0
    %651 = vmatpush2.msra.mxu0 0.0
    %652 = vmatprep.subr.mxu0 0.0
    %653 = vmatpush2.msra.mxu0 0.0
    %654 = vmatprep.subr.mxu0 0.0
    %655 = vmatpush2.msra.mxu0 0.0
    %656 = vmatprep.subr.mxu0 0.0
    %657 = vmatpush2.msra.mxu0 0.0
    %658 = vmatprep.subr.mxu0 0.0
    %659 = vmatpush2.msra.mxu0 0.0
    %660 = vmatprep.subr.mxu0 0.0
    %661 = vmatpush2.msra.mxu0 0.0
    %662 = vmatprep.subr.mxu0 0.0
    %663 = vmatpush2.msra.mxu0 0.0
    %664 = vmatprep.subr.mxu0 0.0
    %665 = vmatpush2.msra.mxu0 0.0
    %666 = vmatprep.subr.mxu0 0.0
    %667 = vmatpush2.msra.mxu0 0.0
    %668 = vmatprep.subr.mxu0 0.0
    %669 = vmatpush2.msra.mxu0 0.0
    %670 = vmatprep.subr.mxu0 0.0
    %671 = vmatpush2.msra.mxu0 0.0
    %672 = vmatprep.subr.mxu0 0.0
    %673 = vmatpush2.msra.mxu0 0.0
    %674 = vmatprep.subr.mxu0 0.0
    %675 = vmatpush2.msra.mxu0 0.0
    %676 = vmatprep.subr.mxu0 0.0
    %677 = vmatpush2.msra.mxu0 0.0
    %678 = vmatprep.mubr.f32.mxu0 0.0
    %v679 = vand.u32 %v513, 4294901760
    %680 = vmatmul.mubr.f32.gmra.mxu0 %v679
    %v681 = vpop.f32.mrf.mxu0
    %v682 = vadd.f32 %v591, %v681
    %v683 = vpop.f32.mrf.mxu0
    %684 = vdwg.mxu0
    %685 = vmatprep.subr.mxu0 0.0
    %686 = vmatpush1.msra.mxu0 0.0
    %687 = vmatprep.subr.mxu0 0.0
    %688 = vmatpush1.msra.mxu0 0.0
    %689 = vmatprep.subr.mxu0 0.0
    %690 = vmatpush1.msra.mxu0 0.0
    %691 = vmatprep.subr.mxu0 0.0
    %692 = vmatpush1.msra.mxu0 0.0
    %693 = vmatprep.subr.mxu0 0.0
    %694 = vmatpush1.msra.mxu0 0.0
    %695 = vmatprep.subr.mxu0 0.0
    %696 = vmatpush1.msra.mxu0 0.0
    %697 = vmatprep.subr.mxu0 0.0
    %698 = vmatpush1.msra.mxu0 0.0
    %699 = vmatprep.subr.mxu0 0.0
    %700 = vmatpush1.msra.mxu0 0.0
    %701 = vmatprep.subr.mxu0 0.0
    %702 = vmatpush1.msra.mxu0 0.0
    %703 = vmatprep.subr.mxu0 0.0
    %704 = vmatpush1.msra.mxu0 0.0
    %705 = vmatprep.subr.mxu0 0.0
    %706 = vmatpush1.msra.mxu0 0.0
    %707 = vmatprep.subr.mxu0 0.0
    %708 = vmatpush1.msra.mxu0 0.0
    %709 = vmatprep.subr.mxu0 0.0
    %v710 = vand.u32 %v503, 4294901760
    %v711 = vsub.f32 %v503, %v710
    %712 = vmatpush1.msra.mxu0 %v711
    %713 = vmatprep.subr.mxu0 0.0
    %v714 = vand.u32 %v502, 4294901760
    %v715 = vsub.f32 %v502, %v714
    %716 = vmatpush1.msra.mxu0 %v715
    %717 = vmatprep.subr.mxu0 0.0
    %v718 = vand.u32 %v501, 4294901760
    %v719 = vsub.f32 %v501, %v718
    %720 = vmatpush1.msra.mxu0 %v719
    %721 = vmatprep.subr.mxu0 0.0
    %v722 = vand.u32 %v500, 4294901760
    %v723 = vsub.f32 %v500, %v722
    %724 = vmatpush1.msra.mxu0 %v723
    %725 = vmatprep.subr.mxu0 0.0
    %726 = vmatpush2.msra.mxu0 0.0
    %727 = vmatprep.subr.mxu0 0.0
    %728 = vmatpush2.msra.mxu0 0.0
    %729 = vmatprep.subr.mxu0 0.0
    %730 = vmatpush2.msra.mxu0 0.0
    %731 = vmatprep.subr.mxu0 0.0
    %732 = vmatpush2.msra.mxu0 0.0
    %733 = vmatprep.subr.mxu0 0.0
    %734 = vmatpush2.msra.mxu0 0.0
    %735 = vmatprep.subr.mxu0 0.0
    %736 = vmatpush2.msra.mxu0 0.0
    %737 = vmatprep.subr.mxu0 0.0
    %738 = vmatpush2.msra.mxu0 0.0
    %739 = vmatprep.subr.mxu0 0.0
    %740 = vmatpush2.msra.mxu0 0.0
    %741 = vmatprep.subr.mxu0 0.0
    %742 = vmatpush2.msra.mxu0 0.0
    %743 = vmatprep.subr.mxu0 0.0
    %744 = vmatpush2.msra.mxu0 0.0
    %745 = vmatprep.subr.mxu0 0.0
    %746 = vmatpush2.msra.mxu0 0.0
    %747 = vmatprep.subr.mxu0 0.0
    %748 = vmatpush2.msra.mxu0 0.0
    %749 = vmatprep.subr.mxu0 0.0
    %750 = vmatpush2.msra.mxu0 0.0
    %751 = vmatprep.subr.mxu0 0.0
    %752 = vmatpush2.msra.mxu0 0.0
    %753 = vmatprep.subr.mxu0 0.0
    %754 = vmatpush2.msra.mxu0 0.0
    %755 = vmatprep.subr.mxu0 0.0
    %756 = vmatpush2.msra.mxu0 0.0
    %757 = vmatprep.mubr.f32.mxu0 0.0
    %v758 = vand.u32 %v513, 4294901760
    %v759 = vsub.f32 %v513, %v758
    %760 = vmatmul.mubr.f32.gmra.mxu0 %v759
    %v761 = vpop.f32.mrf.mxu0
    %v762 = vadd.f32 %v682, %v761
    %v763 = vpop.f32.mrf.mxu0
    %764 = vdwg.mxu0
    %765 = vmatprep.subr.mxu0 0.0
    %766 = vmatpush1.msra.mxu0 0.0
    %767 = vmatprep.subr.mxu0 0.0
    %768 = vmatpush1.msra.mxu0 0.0
    %769 = vmatprep.subr.mxu0 0.0
    %770 = vmatpush1.msra.mxu0 0.0
    %771 = vmatprep.subr.mxu0 0.0
    %772 = vmatpush1.msra.mxu0 0.0
    %773 = vmatprep.subr.mxu0 0.0
    %774 = vmatpush1.msra.mxu0 0.0
    %775 = vmatprep.subr.mxu0 0.0
    %776 = vmatpush1.msra.mxu0 0.0
    %777 = vmatprep.subr.mxu0 0.0
    %778 = vmatpush1.msra.mxu0 0.0
    %779 = vmatprep.subr.mxu0 0.0
    %780 = vmatpush1.msra.mxu0 0.0
    %781 = vmatprep.subr.mxu0 0.0
    %782 = vmatpush1.msra.mxu0 0.0
    %783 = vmatprep.subr.mxu0 0.0
    %784 = vmatpush1.msra.mxu0 0.0
    %785 = vmatprep.subr.mxu0 0.0
    %786 = vmatpush1.msra.mxu0 0.0
    %787 = vmatprep.subr.mxu0 0.0
    %788 = vmatpush1.msra.mxu0 0.0
    %789 = vmatprep.subr.mxu0 0.0
    %v790 = vand.u32 %v503, 4294901760
    %791 = vmatpush1.msra.mxu0 %v790
    %792 = vmatprep.subr.mxu0 0.0
    %v793 = vand.u32 %v502, 4294901760
    %794 = vmatpush1.msra.mxu0 %v793
    %795 = vmatprep.subr.mxu0 0.0
    %v796 = vand.u32 %v501, 4294901760
    %797 = vmatpush1.msra.mxu0 %v796
    %798 = vmatprep.subr.mxu0 0.0
    %v799 = vand.u32 %v500, 4294901760
    %800 = vmatpush1.msra.mxu0 %v799
    %801 = vmatprep.subr.mxu0 0.0
    %802 = vmatpush2.msra.mxu0 0.0
    %803 = vmatprep.subr.mxu0 0.0
    %804 = vmatpush2.msra.mxu0 0.0
    %805 = vmatprep.subr.mxu0 0.0
    %806 = vmatpush2.msra.mxu0 0.0
    %807 = vmatprep.subr.mxu0 0.0
    %808 = vmatpush2.msra.mxu0 0.0
    %809 = vmatprep.subr.mxu0 0.0
    %810 = vmatpush2.msra.mxu0 0.0
    %811 = vmatprep.subr.mxu0 0.0
    %812 = vmatpush2.msra.mxu0 0.0
    %813 = vmatprep.subr.mxu0 0.0
    %814 = vmatpush2.msra.mxu0 0.0
    %815 = vmatprep.subr.mxu0 0.0
    %816 = vmatpush2.msra.mxu0 0.0
    %817 = vmatprep.subr.mxu0 0.0
    %818 = vmatpush2.msra.mxu0 0.0
    %819 = vmatprep.subr.mxu0 0.0
    %820 = vmatpush2.msra.mxu0 0.0
    %821 = vmatprep.subr.mxu0 0.0
    %822 = vmatpush2.msra.mxu0 0.0
    %823 = vmatprep.subr.mxu0 0.0
    %824 = vmatpush2.msra.mxu0 0.0
    %825 = vmatprep.subr.mxu0 0.0
    %826 = vmatpush2.msra.mxu0 0.0
    %827 = vmatprep.subr.mxu0 0.0
    %828 = vmatpush2.msra.mxu0 0.0
    %829 = vmatprep.subr.mxu0 0.0
    %830 = vmatpush2.msra.mxu0 0.0
    %831 = vmatprep.subr.mxu0 0.0
    %832 = vmatpush2.msra.mxu0 0.0
    %833 = vmatprep.mubr.f32.mxu0 0.0
    %v834 = vand.u32 %v513, 4294901760
    %v835 = vsub.f32 %v513, %v834
    %v836 = vand.u32 %v835, 4294901760
    %837 = vmatmul.mubr.f32.gmra.mxu0 %v836
    %v838 = vpop.f32.mrf.mxu0
    %v839 = vadd.f32 %v762, %v838
    %v840 = vpop.f32.mrf.mxu0
    %841 = vdwg.mxu0
    %842 = vmatprep.subr.mxu0 0.0
    %843 = vmatpush1.msra.mxu0 0.0
    %844 = vmatprep.subr.mxu0 0.0
    %845 = vmatpush1.msra.mxu0 0.0
    %846 = vmatprep.subr.mxu0 0.0
    %847 = vmatpush1.msra.mxu0 0.0
    %848 = vmatprep.subr.mxu0 0.0
    %849 = vmatpush1.msra.mxu0 0.0
    %850 = vmatprep.subr.mxu0 0.0
    %851 = vmatpush1.msra.mxu0 0.0
    %852 = vmatprep.subr.mxu0 0.0
    %853 = vmatpush1.msra.mxu0 0.0
    %854 = vmatprep.subr.mxu0 0.0
    %855 = vmatpush1.msra.mxu0 0.0
    %856 = vmatprep.subr.mxu0 0.0
    %857 = vmatpush1.msra.mxu0 0.0
    %858 = vmatprep.subr.mxu0 0.0
    %859 = vmatpush1.msra.mxu0 0.0
    %860 = vmatprep.subr.mxu0 0.0
    %861 = vmatpush1.msra.mxu0 0.0
    %862 = vmatprep.subr.mxu0 0.0
    %863 = vmatpush1.msra.mxu0 0.0
    %864 = vmatprep.subr.mxu0 0.0
    %865 = vmatpush1.msra.mxu0 0.0
    %866 = vmatprep.subr.mxu0 0.0
    %v867 = vand.u32 %v503, 4294901760
    %v868 = vsub.f32 %v503, %v867
    %v869 = vand.u32 %v868, 4294901760
    %870 = vmatpush1.msra.mxu0 %v869
    %871 = vmatprep.subr.mxu0 0.0
    %v872 = vand.u32 %v502, 4294901760
    %v873 = vsub.f32 %v502, %v872
    %v874 = vand.u32 %v873, 4294901760
    %875 = vmatpush1.msra.mxu0 %v874
    %876 = vmatprep.subr.mxu0 0.0
    %v877 = vand.u32 %v501, 4294901760
    %v878 = vsub.f32 %v501, %v877
    %v879 = vand.u32 %v878, 4294901760
    %880 = vmatpush1.msra.mxu0 %v879
    %881 = vmatprep.subr.mxu0 0.0
    %v882 = vand.u32 %v500, 4294901760
    %v883 = vsub.f32 %v500, %v882
    %v884 = vand.u32 %v883, 4294901760
    %885 = vmatpush1.msra.mxu0 %v884
    %886 = vmatprep.subr.mxu0 0.0
    %887 = vmatpush2.msra.mxu0 0.0
    %888 = vmatprep.subr.mxu0 0.0
    %889 = vmatpush2.msra.mxu0 0.0
    %890 = vmatprep.subr.mxu0 0.0
    %891 = vmatpush2.msra.mxu0 0.0
    %892 = vmatprep.subr.mxu0 0.0
    %893 = vmatpush2.msra.mxu0 0.0
    %894 = vmatprep.subr.mxu0 0.0
    %895 = vmatpush2.msra.mxu0 0.0
    %896 = vmatprep.subr.mxu0 0.0
    %897 = vmatpush2.msra.mxu0 0.0
    %898 = vmatprep.subr.mxu0 0.0
    %899 = vmatpush2.msra.mxu0 0.0
    %900 = vmatprep.subr.mxu0 0.0
    %901 = vmatpush2.msra.mxu0 0.0
    %902 = vmatprep.subr.mxu0 0.0
    %903 = vmatpush2.msra.mxu0 0.0
    %904 = vmatprep.subr.mxu0 0.0
    %905 = vmatpush2.msra.mxu0 0.0
    %906 = vmatprep.subr.mxu0 0.0
    %907 = vmatpush2.msra.mxu0 0.0
    %908 = vmatprep.subr.mxu0 0.0
    %909 = vmatpush2.msra.mxu0 0.0
    %910 = vmatprep.subr.mxu0 0.0
    %911 = vmatpush2.msra.mxu0 0.0
    %912 = vmatprep.subr.mxu0 0.0
    %913 = vmatpush2.msra.mxu0 0.0
    %914 = vmatprep.subr.mxu0 0.0
    %915 = vmatpush2.msra.mxu0 0.0
    %916 = vmatprep.subr.mxu0 0.0
    %917 = vmatpush2.msra.mxu0 0.0
    %918 = vmatprep.mubr.f32.mxu0 0.0
    %v919 = vand.u32 %v513, 4294901760
    %920 = vmatmul.mubr.f32.gmra.mxu0 %v919
    %v921 = vpop.f32.mrf.mxu0
    %v922 = vadd.f32 %v839, %v921
    %v923 = vpop.f32.mrf.mxu0
    %924 = vdwg.mxu0
    %925 = vmatprep.subr.mxu0 0.0
    %926 = vmatpush1.msra.mxu0 0.0
    %927 = vmatprep.subr.mxu0 0.0
    %928 = vmatpush1.msra.mxu0 0.0
    %929 = vmatprep.subr.mxu0 0.0
    %930 = vmatpush1.msra.mxu0 0.0
    %931 = vmatprep.subr.mxu0 0.0
    %932 = vmatpush1.msra.mxu0 0.0
    %933 = vmatprep.subr.mxu0 0.0
    %934 = vmatpush1.msra.mxu0 0.0
    %935 = vmatprep.subr.mxu0 0.0
    %936 = vmatpush1.msra.mxu0 0.0
    %937 = vmatprep.subr.mxu0 0.0
    %938 = vmatpush1.msra.mxu0 0.0
    %939 = vmatprep.subr.mxu0 0.0
    %940 = vmatpush1.msra.mxu0 0.0
    %941 = vmatprep.subr.mxu0 0.0
    %942 = vmatpush1.msra.mxu0 0.0
    %943 = vmatprep.subr.mxu0 0.0
    %944 = vmatpush1.msra.mxu0 0.0
    %945 = vmatprep.subr.mxu0 0.0
    %946 = vmatpush1.msra.mxu0 0.0
    %947 = vmatprep.subr.mxu0 0.0
    %948 = vmatpush1.msra.mxu0 0.0
    %949 = vmatprep.subr.mxu0 0.0
    %v950 = vand.u32 %v503, 4294901760
    %951 = vmatpush1.msra.mxu0 %v950
    %952 = vmatprep.subr.mxu0 0.0
    %v953 = vand.u32 %v502, 4294901760
    %954 = vmatpush1.msra.mxu0 %v953
    %955 = vmatprep.subr.mxu0 0.0
    %v956 = vand.u32 %v501, 4294901760
    %957 = vmatpush1.msra.mxu0 %v956
    %958 = vmatprep.subr.mxu0 0.0
    %v959 = vand.u32 %v500, 4294901760
    %960 = vmatpush1.msra.mxu0 %v959
    %961 = vmatprep.subr.mxu0 0.0
    %962 = vmatpush2.msra.mxu0 0.0
    %963 = vmatprep.subr.mxu0 0.0
    %964 = vmatpush2.msra.mxu0 0.0
    %965 = vmatprep.subr.mxu0 0.0
    %966 = vmatpush2.msra.mxu0 0.0
    %967 = vmatprep.subr.mxu0 0.0
    %968 = vmatpush2.msra.mxu0 0.0
    %969 = vmatprep.subr.mxu0 0.0
    %970 = vmatpush2.msra.mxu0 0.0
    %971 = vmatprep.subr.mxu0 0.0
    %972 = vmatpush2.msra.mxu0 0.0
    %973 = vmatprep.subr.mxu0 0.0
    %974 = vmatpush2.msra.mxu0 0.0
    %975 = vmatprep.subr.mxu0 0.0
    %976 = vmatpush2.msra.mxu0 0.0
    %977 = vmatprep.subr.mxu0 0.0
    %978 = vmatpush2.msra.mxu0 0.0
    %979 = vmatprep.subr.mxu0 0.0
    %980 = vmatpush2.msra.mxu0 0.0
    %981 = vmatprep.subr.mxu0 0.0
    %982 = vmatpush2.msra.mxu0 0.0
    %983 = vmatprep.subr.mxu0 0.0
    %984 = vmatpush2.msra.mxu0 0.0
    %985 = vmatprep.subr.mxu0 0.0
    %986 = vmatpush2.msra.mxu0 0.0
    %987 = vmatprep.subr.mxu0 0.0
    %988 = vmatpush2.msra.mxu0 0.0
    %989 = vmatprep.subr.mxu0 0.0
    %990 = vmatpush2.msra.mxu0 0.0
    %991 = vmatprep.subr.mxu0 0.0
    %992 = vmatpush2.msra.mxu0 0.0
    %993 = vmatprep.mubr.f32.mxu0 0.0
    %v994 = vand.u32 %v513, 4294901760
    %995 = vmatmul.mubr.f32.gmra.mxu0 %v994
    %v996 = vpop.f32.mrf.mxu0
    %v997 = vadd.f32 %v922, %v996
    %v998 = vpop.f32.mrf.mxu0
    %999 = vdwg.mxu0
    %v1000 = vxor.u32 %v997, 2147483648
    %v1001 = vmul.f32 %v1000, 1.442695
    %v1002 = vpow.pop %v1001
    %v1003 = vadd.f32 %v1002, 1.0
    %v1004 = vrcp.pop %v1003
    %v1005 = vmul.f32 1.0, %v1004
    %vm1006 = vcmask 64512
    %1007 = vst.msk [vmem:[#allocation2] sm:$0xff] %vm1006, %v1005
    // Predicated region
    $region22: #{net_forward.1} parent=1 // pred_check
      _
    $region23: #{net_forward.1} parent=1 // pred_check_branch
      %1009 = sbr.rel (0) target = $region25
    $region24: #{net_forward.1} parent=1 // pred_region
      %s1011 = ssub.s32 128, 128
      %1012 = vsyncadd [#allocation3], %s1011
      %s1014 = sshll.u32 [#allocation2], 4
      %s1015 = int_to_ptr.vmem [resolvable:$true] %s1014
      %1017 = dma.vmem_to_hbm [thread:$0]  %s1015, 128, %s5, [#allocation3]
    $region25: #{net_forward.1} parent=1 // pred_fallthru
      _
    // Predicated region
    $region26: #{net_forward.1} parent=1 // pred_check
      _
    $region27: #{net_forward.1} parent=1 // pred_check_branch
      %1019 = sbr.rel (0) target = $region29
    $region28: #{net_forward.1} parent=1 // pred_region
      %1020 = dma.done [#allocation3], 128
    $region29: #{net_forward.1} parent=1 // pred_fallthru
      _
    %1021 = vsyncpa [#allocation3], 1

</llo_original>
